<compile_context>
chip_gen: v7x
topology: tpu7x:2x2x1
jax: 0.10.0
libtpu: 0.0.40
codegen_flags: <defaults>
</compile_context>

<pallas_src>
import functools

import jax
import jax.numpy as jnp
from jax.experimental import pallas as pl
from jax.experimental.pallas import tpu as pltpu


def _round_up(v: int, m: int) -> int:
    return ((v + m - 1) // m) * m


def _cdiv(a: int, b: int) -> int:
    return (a + b - 1) // b


def _choose_tile_n(n: int, c: int, itemsize: int, align: int,
                   target_bytes: int = 2 << 20) -> int:
    # Size the batch tile by bytes so each grid step's x DMA (~2 MiB) amortizes
    # the ~0.35 us per-step overhead; clamp to the (aligned) batch size.
    rows = max(align, target_bytes // max(1, c * itemsize))
    tile = min(_round_up(rows, align), _round_up(n, align))
    # Keep >= 2 grid steps when the batch allows so both v7x cores get work.
    if tile >= n and n >= 2 * align:
        tile = _round_up(_cdiv(n, 2), align)
    return max(align, tile)


def _meln_loss_kernel(x_ref, tgt_ref, combo_ref, out_ref, *, n_total, tile_n):
    # x_ref:     (tile_n, C) float   VMEM  (one batch tile)
    # tgt_ref:   (1, 1, tile_n) i32  VMEM  (lane-major targets for this tile)
    # combo_ref: (1, 1) f32          SMEM  ((1 + temperature) / booster)
    # out_ref:   (1, 1, 128) f32     VMEM  (per-tile partial loss sum)
    i = pl.program_id(0)

    xf = x_ref[...].astype(jnp.float32)                       # (tile_n, C)
    tn, c = xf.shape
    combo = combo_ref[0, 0]

    # Lane-major targets -> per-row column (tile_n, 1).  Tiny int32 relayout;
    # handled by the otherwise-idle XLU (or a small scratch roundtrip).
    tgt_col = tgt_ref[...].reshape(tn, 1)

    # ---- pass 1 over x: sumsq, row max/min, raw-x target pick (no z built).
    sumsq = jnp.sum(xf * xf, axis=-1, keepdims=True)          # (tile_n, 1)
    xmax = jnp.max(xf, axis=-1, keepdims=True)                # (tile_n, 1)
    xmin = jnp.min(xf, axis=-1, keepdims=True)                # (tile_n, 1)
    cls_ids = jax.lax.broadcasted_iota(jnp.int32, (tn, c), 1)
    picked_x = jnp.sum(jnp.where(cls_ids == tgt_col, xf, 0.0),
                       axis=-1, keepdims=True)                # (tile_n, 1)

    norms = jnp.sqrt(sumsq) + 1e-7                            # eps as in torch ref
    scale = combo / norms                                     # z = scale * x
    # Row-max of z without materializing z; valid for either sign of `combo`.
    m_z = scale * jnp.where(combo >= 0.0, xmax, xmin)         # (tile_n, 1)

    # ---- pass 2 over x: numerically stable log-sum-exp of z = scale * x.
    sum_exp = jnp.sum(jnp.exp(xf * scale - m_z), axis=-1, keepdims=True)
    lse = m_z + jnp.log(sum_exp)                              # (tile_n, 1)

    per_row = lse - scale * picked_x                          # per-row CE

    # Mask rows past the true batch size (NaN-safe select, not a multiply).
    row_ids = i * tile_n + jax.lax.broadcasted_iota(jnp.int32, (tn, 1), 0)
    valid = row_ids < n_total
    partial = jnp.sum(jnp.where(valid, per_row, 0.0))         # scalar

    out_ref[...] = jnp.broadcast_to(partial, out_ref.shape).astype(out_ref.dtype)


def margin_enhanced_logit_norm_loss(x, target, temperature, booster, *,
                                    tile_n=None):
    """Forward pass of MarginEnhancedLogitNormLoss.

    x:      (N, C) float logits
    target: (N,)   integer class labels
    Returns scalar float32 loss (mean cross-entropy on normalized logits).
    """
    n, c = x.shape
    itemsize = jnp.dtype(x.dtype).itemsize
    align = 16 if itemsize < 4 else 8                         # sublane packing

    if tile_n is None:
        tile_n = _choose_tile_n(n, c, itemsize, align)
    else:
        tile_n = max(align, min(_round_up(tile_n, align), _round_up(n, align)))
    num_tiles = _cdiv(n, tile_n)

    # Lane-major targets (num_tiles, 1, tile_n) int32, zero-padded.  Avoids the
    # (N, 1) layout whose lane dim of 1 gets padded to 128 in VMEM / DMA.
    padded_n = num_tiles * tile_n
    tgt = jnp.zeros((padded_n,), jnp.int32)
    tgt = tgt.at[:n].set(target.astype(jnp.int32).reshape(n))
    tgt = tgt.reshape(num_tiles, 1, tile_n)

    # Fold (1 + temperature) / booster into a single SMEM scalar.
    combo = ((1.0 + jnp.asarray(temperature, jnp.float32))
             / jnp.asarray(booster, jnp.float32)).reshape(1, 1)

    kernel = functools.partial(_meln_loss_kernel, n_total=n, tile_n=tile_n)

    cost = pl.CostEstimate(
        flops=8 * n * c,
        transcendentals=n * c,
        bytes_accessed=n * c * itemsize + padded_n * 4 + num_tiles * 512 + 4,
    )

    partials = pl.pallas_call(
        kernel,
        out_shape=jax.ShapeDtypeStruct((num_tiles, 1, 128), jnp.float32),
        grid=(num_tiles,),
        in_specs=[
            # x: streamed per batch tile (Pallas double-buffers the DMA).
            pl.BlockSpec((tile_n, c), lambda i: (i, 0)),
            # targets: lane-dense (1, 1, tile_n) int32 block per tile.
            pl.BlockSpec((1, 1, tile_n), lambda i: (i, 0, 0)),
            # folded scalar parameter in SMEM, same block every step.
            pl.BlockSpec((1, 1), lambda i: (0, 0),
                         memory_space=pltpu.MemorySpace.SMEM),
        ],
        # Independent lane-dense per-tile partial sums -> batch axis parallel.
        out_specs=pl.BlockSpec((1, 1, 128), lambda i: (i, 0, 0)),
        compiler_params=pltpu.CompilerParams(
            dimension_semantics=("parallel",),
            # ~2 MiB double-buffered x blocks + a few f32 temporaries stay far
            # below 32 MiB, which is safe on all generations (<= v7x headroom).
            vmem_limit_bytes=32 * 1024 * 1024,
        ),
        cost_estimate=cost,
    )(x, tgt, combo)

    # Final mean over the true N on the tiny partial-sum vector in plain JAX.
    return jnp.sum(partials[:, 0, 0]) / jnp.float32(n)


def _reference_loss(x, target, temperature, booster):
    # Pure-JAX reference mirroring the PyTorch module.
    x = x.astype(jnp.float32)
    norms = jnp.linalg.norm(x, axis=-1, keepdims=True) + 1e-7
    z = x / (booster * norms) * (1.0 + temperature)
    logp = jax.nn.log_softmax(z, axis=-1)
    nll = -jnp.take_along_axis(logp, target[:, None].astype(jnp.int32), axis=-1)
    return jnp.mean(nll)


if __name__ == "__main__":
    # Deterministic parameter init (matches module __init__).
    initial_temperature = 1.0
    initial_booster = 2.0

    key = jax.random.PRNGKey(0)
    kx, kt = jax.random.split(key)

    # Small aligned case: 64 rows x 128 classes (auto tile -> 2 grid steps).
    batch, num_classes = 64, 128
    x = jax.random.normal(kx, (batch, num_classes), dtype=jnp.float32)
    target = jax.random.randint(kt, (batch,), 0, num_classes, dtype=jnp.int32)

    loss = margin_enhanced_logit_norm_loss(x, target, initial_temperature,
                                           initial_booster)
    loss = jax.block_until_ready(loss)
    ref = _reference_loss(x, target, initial_temperature, initial_booster)
    assert jnp.allclose(loss, ref, atol=1e-5, rtol=1e-5), (loss, ref)

    # Ragged case: 60 rows with an explicit small tile exercises the tail mask.
    x2, target2 = x[:60], target[:60]
    loss2 = margin_enhanced_logit_norm_loss(x2, target2, initial_temperature,
                                            initial_booster, tile_n=16)
    loss2 = jax.block_until_ready(loss2)
    ref2 = _reference_loss(x2, target2, initial_temperature, initial_booster)
    assert jnp.allclose(loss2, ref2, atol=1e-5, rtol=1e-5), (loss2, ref2)

    print("KERNEL_OK")
</pallas_src>

<mosaic_0001>
module attributes {stable_mosaic.version = 11 : i64} {
  func.func @_meln_loss_kernel(%arg0: i32, %arg1: memref<32x128xf32, #tpu.memory_space<vmem>>, %arg2: memref<1x1x32xi32, #tpu.memory_space<vmem>>, %arg3: memref<1x1xf32, #tpu.memory_space<smem>>, %arg4: memref<1x1x128xf32, #tpu.memory_space<vmem>>) attributes {dimension_semantics = [#tpu.dimension_semantics<parallel>], iteration_bounds = array<i64: 2>, scalar_prefetch = 0 : i64, scratch_operands = 0 : i64, tpu.core_type = #tpu.core_type<tc>, window_params = [{transform_indices = @transform_0, window_bounds = array<i64: 32, 128>}, {transform_indices = @transform_1, window_bounds = array<i64: 1, 1, 32>}, {transform_indices = @transform_2, window_bounds = array<i64: 1, 1>}, {transform_indices = @transform_3, window_bounds = array<i64: 1, 1, 128>}]} {
    %c0 = arith.constant 0 : index
    %c0_0 = arith.constant 0 : index
    %0 = vector.load %arg1[%c0, %c0_0] : memref<32x128xf32, #tpu.memory_space<vmem>>, vector<32x128xf32>
    %c0_1 = arith.constant 0 : index
    %c0_2 = arith.constant 0 : index
    %1 = memref.load %arg3[%c0_1, %c0_2] : memref<1x1xf32, #tpu.memory_space<smem>>
    %c0_3 = arith.constant 0 : index
    %c0_4 = arith.constant 0 : index
    %c0_5 = arith.constant 0 : index
    %2 = vector.load %arg2[%c0_3, %c0_4, %c0_5] : memref<1x1x32xi32, #tpu.memory_space<vmem>>, vector<1x1x32xi32>
    %3 = vector.shape_cast %2 : vector<1x1x32xi32> to vector<32x1xi32>
    %4 = arith.mulf %0, %0 : vector<32x128xf32>
    %cst = arith.constant dense<0.000000e+00> : vector<32xf32>
    %5 = vector.multi_reduction <add>, %4, %cst [1] : vector<32x128xf32> to vector<32xf32>
    %6 = vector.shape_cast %5 : vector<32xf32> to vector<32x1xf32>
    %cst_6 = arith.constant dense<0xFF800000> : vector<32xf32>
    %7 = vector.multi_reduction <maximumf>, %0, %cst_6 [1] : vector<32x128xf32> to vector<32xf32>
    %8 = vector.shape_cast %7 : vector<32xf32> to vector<32x1xf32>
    %cst_7 = arith.constant dense<0x7F800000> : vector<32xf32>
    %9 = vector.multi_reduction <minimumf>, %0, %cst_7 [1] : vector<32x128xf32> to vector<32xf32>
    %10 = vector.shape_cast %9 : vector<32xf32> to vector<32x1xf32>
    %11 = tpu.iota {dimensions = array<i32: 1>} : vector<32x128xi32>
    %12 = vector.broadcast %3 : vector<32x1xi32> to vector<32x128xi32>
    %13 = arith.cmpi eq, %11, %12 : vector<32x128xi32>
    %cst_8 = arith.constant 0.000000e+00 : f32
    %14 = vector.broadcast %cst_8 : f32 to vector<32x128xf32>
    %15 = arith.select %13, %0, %14 : vector<32x128xi1>, vector<32x128xf32>
    %cst_9 = arith.constant dense<0.000000e+00> : vector<32xf32>
    %16 = vector.multi_reduction <add>, %15, %cst_9 [1] : vector<32x128xf32> to vector<32xf32>
    %17 = vector.shape_cast %16 : vector<32xf32> to vector<32x1xf32>
    %18 = math.sqrt %6 : vector<32x1xf32>
    %cst_10 = arith.constant 1.000000e-07 : f32
    %19 = vector.broadcast %cst_10 : f32 to vector<32x1xf32>
    %20 = arith.addf %18, %19 : vector<32x1xf32>
    %21 = vector.broadcast %1 : f32 to vector<32x1xf32>
    %22 = arith.divf %21, %20 : vector<32x1xf32>
    %cst_11 = arith.constant 0.000000e+00 : f32
    %23 = arith.cmpf oge, %1, %cst_11 : f32
    %24 = arith.select %23, %8, %10 : vector<32x1xf32>
    %25 = arith.mulf %22, %24 : vector<32x1xf32>
    %26 = vector.broadcast %22 : vector<32x1xf32> to vector<32x128xf32>
    %27 = arith.mulf %0, %26 : vector<32x128xf32>
    %28 = vector.broadcast %25 : vector<32x1xf32> to vector<32x128xf32>
    %29 = arith.subf %27, %28 : vector<32x128xf32>
    %30 = math.exp %29 : vector<32x128xf32>
    %cst_12 = arith.constant dense<0.000000e+00> : vector<32xf32>
    %31 = vector.multi_reduction <add>, %30, %cst_12 [1] : vector<32x128xf32> to vector<32xf32>
    %32 = vector.shape_cast %31 : vector<32xf32> to vector<32x1xf32>
    %33 = math.log %32 : vector<32x1xf32>
    %34 = arith.addf %25, %33 : vector<32x1xf32>
    %35 = arith.mulf %22, %17 : vector<32x1xf32>
    %36 = arith.subf %34, %35 : vector<32x1xf32>
    %c32_i32 = arith.constant 32 : i32
    %37 = arith.muli %arg0, %c32_i32 : i32
    %38 = tpu.iota {dimensions = array<i32: 0>} : vector<32x1xi32>
    %39 = vector.broadcast %37 : i32 to vector<32x1xi32>
    %40 = arith.addi %39, %38 : vector<32x1xi32>
    %c64_i32 = arith.constant 64 : i32
    %41 = vector.broadcast %c64_i32 : i32 to vector<32x1xi32>
    %42 = arith.cmpi slt, %40, %41 : vector<32x1xi32>
    %cst_13 = arith.constant 0.000000e+00 : f32
    %43 = vector.broadcast %cst_13 : f32 to vector<32x1xf32>
    %44 = arith.select %42, %36, %43 : vector<32x1xi1>, vector<32x1xf32>
    %45 = vector.shape_cast %44 : vector<32x1xf32> to vector<1x32x1xf32>
    %cst_14 = arith.constant dense<0.000000e+00> : vector<1xf32>
    %46 = vector.multi_reduction <add>, %45, %cst_14 [1, 2] : vector<1x32x1xf32> to vector<1xf32>
    %47 = vector.shape_cast %46 : vector<1xf32> to vector<1x1x1xf32>
    %48 = vector.extract %47[0, 0, 0] : f32 from vector<1x1x1xf32>
    %49 = vector.broadcast %48 : f32 to vector<1x1x128xf32>
    %c0_15 = arith.constant 0 : index
    %c0_16 = arith.constant 0 : index
    %c0_17 = arith.constant 0 : index
    %50 = vector.load %arg4[%c0_15, %c0_16, %c0_17] : memref<1x1x128xf32, #tpu.memory_space<vmem>>, vector<1x1x128xf32>
    tpu.vector_store %arg4[%c0_15, %c0_16, %c0_17], %49 {strides = array<i32>} : memref<1x1x128xf32, #tpu.memory_space<vmem>>, vector<1x1x128xf32>,
    return
  }
  func.func @transform_0(%arg0: i32) -> (i32, i32) {
    %c0_i32 = arith.constant 0 : i32
    %c0_i32_0 = arith.constant 0 : i32
    return %arg0, %c0_i32 : i32, i32
  }
  func.func @transform_1(%arg0: i32) -> (i32, i32, i32) {
    %c0_i32 = arith.constant 0 : i32
    %c0_i32_0 = arith.constant 0 : i32
    %c0_i32_1 = arith.constant 0 : i32
    return %arg0, %c0_i32, %c0_i32_0 : i32, i32, i32
  }
  func.func @transform_2(%arg0: i32) -> (i32, i32) {
    %c0_i32 = arith.constant 0 : i32
    %c0_i32_0 = arith.constant 0 : i32
    %c0_i32_1 = arith.constant 0 : i32
    return %c0_i32, %c0_i32_0 : i32, i32
  }
  func.func @transform_3(%arg0: i32) -> (i32, i32, i32) {
    %c0_i32 = arith.constant 0 : i32
    %c0_i32_0 = arith.constant 0 : i32
    %c0_i32_1 = arith.constant 0 : i32
    return %arg0, %c0_i32, %c0_i32_0 : i32, i32, i32
  }
}

</mosaic_0001>

<llo_original>
// kernel: tpu_custom_call.1
$region0: #{tpu_custom_call.1}
  #allocation0 [shape = 'u32[]', space=smem, size = 0x4, offset = 0x4, fixed_abs, tag = 'smem constant byte address 0x4 - core index']
  #allocation1 [shape = 'u32[144,128]{1,0:T(1,128)}', space=vmem, size = 0x12000, scoped, tag = 'internal scratch']
  #allocation2 [shape = 'f32[1,1]{1,0:T(1,128)S(6)}', space=smem, size = 0x200, scoped, tag = 'scoped memory for tpu_custom_call.1']
  %s0 = inlined_call_operand.hbm [shape: f32[64,128], index: 0, kind: input, shape index: {}]
  %s1 = inlined_call_operand.vmem [shape: s32[2,1,32], index: 1, kind: input, shape index: {}]
  %s2 = inlined_call_operand.<no memory space> [shape: f32[1,1], index: 2, kind: input, shape index: {}]
  %s3 = inlined_call_operand.hbm [shape: f32[2,1,128], index: 3, kind: output, shape index: {}]
  %s4 = sld [smem:[#allocation0]]
  $region49: #{tpu_custom_call.1} parent=0
    _
  %s6 = ssub.s32 1, %s4
  %s7 = scalar_select 0, %s6, %s4
  %8 = sst [smem:[#allocation2]] %s2
  $region1: #{tpu_custom_call.1} parent=0
    #allocation3 [shape = 'u8[32768]{0}', space=vmem, size = 0x8000, scoped, tag = 'input window, operand 0']
    #allocation4 [shape = 's32[2]{0}', space=sflag, size = 0x8, scoped, tag = 'scoped memory for tpu_custom_call.1']
    #allocation5 [shape = 's32[2]{0}', space=sflag, size = 0x8, scoped, tag = 'scoped memory for tpu_custom_call.1']
    #allocation6 [shape = 'u8[1024]{0}', space=vmem, size = 0x400, scoped, tag = 'output window, operand 0']
    %9 = vsyncpa [#allocation4], 0
    %s10 = scalar_lea.sflag [#allocation4], 1
    %11 = vsyncpa %s10, 0
    %12 = vsyncpa [#allocation5], 0
    %s13 = scalar_lea.sflag [#allocation5], 1
    %14 = vsyncpa %s13, 0
    loop: start=0, step=1, limit=4
    $region2: #{tpu_custom_call.1} parent=1 // loop_pre_header
      _
    $region3: #{tpu_custom_call.1} parent=1 // loop_header
      %s16 = sphi 0, %s20
      %p17 = scmp.ge.s32.totalorder %s16, 4
      %s26 = sphi 0, %s28
      %s29 = sphi 0, %s26
      %s30 = sphi 0, %s29
      %s46 = sphi 0, %s30
      %s52 = sphi 0, %s54
      %s55 = sphi 0, %s52
      %s56 = sphi 0, %s55
      %s72 = sphi 0, %s56
      %s76 = sphi 0, %s76
      %s78 = sphi 0, %s76
      %s79 = sphi 0, %s78
      %s93 = sphi 0, %s79
      %s99 = sphi 0, %s101
      %s102 = sphi 0, %s99
      %s103 = sphi 0, %s102
      %s119 = sphi 0, %s103
    $region4: #{tpu_custom_call.1} parent=1 // loop_header_branch
      %19 = sbr.rel (%p17) target = $region8
    $region5: #{tpu_custom_call.1} parent=1 // loop_body
      %s21 = ssub.s32 %s16, 1
      %s22 = ssub.s32 %s16, 2
      %s23 = sadd.s32 %s16, 1
      %s24 = ssub.s32 %s16, %s23
      %p25 = scmp.eq.s32.totalorder %s24, 0
      %s27 = sadd.s32 %s26, 1
      %s28 = scalar_select %p25, %s26, %s27
      %p31 = pneg %p25
      %p32 = scmp.eq.s32.totalorder %s16, 1
      %p33 = por %p31, %p32
      %p34 = scmp.ne.s32.totalorder %s26, %s29
      %p35 = scmp.eq.s32.totalorder %s16, 0
      %p36 = por %p34, %p35
      %p37 = scmp.ne.s32.totalorder %s26, %s29
      %p38 = scmp.eq.s32.totalorder %s21, 1
      %p39 = por %p37, %p38
      %p40 = scmp.ne.s32.totalorder %s29, %s30
      %p41 = scmp.eq.s32.totalorder %s21, 0
      %p42 = por %p40, %p41
      %p43 = scmp.ne.s32.totalorder %s29, %s30
      %p44 = scmp.eq.s32.totalorder %s22, 1
      %p45 = por %p43, %p44
      %p47 = scmp.ne.s32.totalorder %s30, %s46
      %p48 = scmp.eq.s32.totalorder %s22, 0
      %p49 = por %p47, %p48
      %s50 = ssub.s32 %s16, %s23
      %p51 = scmp.eq.s32.totalorder %s50, 0
      %s53 = sadd.s32 %s52, 1
      %s54 = scalar_select %p51, %s52, %s53
      %p57 = pneg %p51
      %p58 = scmp.eq.s32.totalorder %s16, 1
      %p59 = por %p57, %p58
      %p60 = scmp.ne.s32.totalorder %s52, %s55
      %p61 = scmp.eq.s32.totalorder %s16, 0
      %p62 = por %p60, %p61
      %p63 = scmp.ne.s32.totalorder %s52, %s55
      %p64 = scmp.eq.s32.totalorder %s21, 1
      %p65 = por %p63, %p64
      %p66 = scmp.ne.s32.totalorder %s55, %s56
      %p67 = scmp.eq.s32.totalorder %s21, 0
      %p68 = por %p66, %p67
      %p69 = scmp.ne.s32.totalorder %s55, %s56
      %p70 = scmp.eq.s32.totalorder %s22, 1
      %p71 = por %p69, %p70
      %p73 = scmp.ne.s32.totalorder %s56, %s72
      %p74 = scmp.eq.s32.totalorder %s22, 0
      %p75 = por %p73, %p74
      %s77 = sadd.s32 %s76, 1
      %p80 = scmp.eq.s32.totalorder %s16, 1
      %p81 = scmp.ne.s32.totalorder %s76, %s78
      %p82 = scmp.eq.s32.totalorder %s16, 0
      %p83 = por %p81, %p82
      %p84 = scmp.ne.s32.totalorder %s76, %s78
      %p85 = scmp.eq.s32.totalorder %s21, 1
      %p86 = por %p84, %p85
      %p87 = scmp.ne.s32.totalorder %s78, %s79
      %p88 = scmp.eq.s32.totalorder %s21, 0
      %p89 = por %p87, %p88
      %p90 = scmp.ne.s32.totalorder %s78, %s79
      %p91 = scmp.eq.s32.totalorder %s22, 1
      %p92 = por %p90, %p91
      %p94 = scmp.ne.s32.totalorder %s79, %s93
      %p95 = scmp.eq.s32.totalorder %s22, 0
      %p96 = por %p94, %p95
      %s97 = ssub.s32 %s16, %s23
      %p98 = scmp.eq.s32.totalorder %s97, 0
      %s100 = sadd.s32 %s99, 1
      %s101 = scalar_select %p98, %s99, %s100
      %p104 = pneg %p98
      %p105 = scmp.eq.s32.totalorder %s16, 1
      %p106 = por %p104, %p105
      %p107 = scmp.ne.s32.totalorder %s99, %s102
      %p108 = scmp.eq.s32.totalorder %s16, 0
      %p109 = por %p107, %p108
      %p110 = scmp.ne.s32.totalorder %s99, %s102
      %p111 = scmp.eq.s32.totalorder %s21, 1
      %p112 = por %p110, %p111
      %p113 = scmp.ne.s32.totalorder %s102, %s103
      %p114 = scmp.eq.s32.totalorder %s21, 0
      %p115 = por %p113, %p114
      %p116 = scmp.ne.s32.totalorder %s102, %s103
      %p117 = scmp.eq.s32.totalorder %s22, 1
      %p118 = por %p116, %p117
      %p120 = scmp.ne.s32.totalorder %s103, %s119
      %p121 = scmp.eq.s32.totalorder %s22, 0
      %p122 = por %p120, %p121
      %p123 = scmp.le.s32.totalorder 1, %s16
      %p124 = scmp.lt.s32.totalorder %s16, 3
      %p125 = pnand %p123, %p124
      %p126 = pneg %p125
      // Predicated region
      $region9: #{tpu_custom_call.1} parent=5 // pred_check
        _
      $region10: #{tpu_custom_call.1} parent=5 // pred_check_branch
        %128 = sbr.rel (%p125) target = $region12
      $region11: #{tpu_custom_call.1} parent=5 // pred_region
        %s129 = ssub.s32 %s16, 1
        // Predicated region
        $region13: #{tpu_custom_call.1} parent=11 // pred_check
          %p130 = pneg %p89
        $region14: #{tpu_custom_call.1} parent=11 // pred_check_branch
          %132 = sbr.rel (%p130) target = $region16
        $region15: #{tpu_custom_call.1} parent=11 // pred_region
          _
        $region16: #{tpu_custom_call.1} parent=11 // pred_fallthru
          _
      $region12: #{tpu_custom_call.1} parent=5 // pred_fallthru
        _
      %p133 = scmp.lt.s32.totalorder %s16, 2
      // Predicated region
      $region17: #{tpu_custom_call.1} parent=5 // pred_check
        %p134 = pneg %p133
      $region18: #{tpu_custom_call.1} parent=5 // pred_check_branch
        %136 = sbr.rel (%p134) target = $region20
      $region19: #{tpu_custom_call.1} parent=5 // pred_region
        // Predicated region
        $region21: #{tpu_custom_call.1} parent=19 // pred_check
          %p137 = pneg %p36
        $region22: #{tpu_custom_call.1} parent=19 // pred_check_branch
          %139 = sbr.rel (%p137) target = $region24
        $region23: #{tpu_custom_call.1} parent=19 // pred_region
          %s140 = sand.u32 %s26, 1
          %s141 = scalar_lea.sflag [#allocation4], %s140
          %s142 = sand.u32 %s26, 1
          %s143 = smul.addr %s142, 32
          %s144 = scalar_lea.vmem [#allocation3], %s143
          %s145 = smul.u32 4, %s16
          %s147 = ssub.s32 512, 512
          %148 = vsyncadd %s141, %s147
          %s149 = smul.addr %s145, 128
          %s150 = scalar_lea.hbm %s0, %s149
          %s151 = sshll.u32 %s144, 4
          %s152 = int_to_ptr.vmem [resolvable:$true] %s151
          %157 = dma.hbm_to_vmem [thread:$0]  %s150, 512, %s152, %s141, 128, 128, 8
        $region24: #{tpu_custom_call.1} parent=19 // pred_fallthru
          _
        // Predicated region
        $region25: #{tpu_custom_call.1} parent=19 // pred_check
          %p158 = pneg %p62
        $region26: #{tpu_custom_call.1} parent=19 // pred_check_branch
          %160 = sbr.rel (%p158) target = $region28
        $region27: #{tpu_custom_call.1} parent=19 // pred_region
          %p161 = scmp.lt.s32.totalorder %s16, 1
          %s162 = scalar_select %p161, %s16, 1
          %s163 = scalar_lea.vmem %s1, %s162
        $region28: #{tpu_custom_call.1} parent=19 // pred_fallthru
          _
      $region20: #{tpu_custom_call.1} parent=5 // pred_fallthru
        _
      %p164 = scmp.le.s32.totalorder 1, %s16
      %p165 = scmp.lt.s32.totalorder %s16, 3
      %p166 = pnand %p164, %p165
      %p167 = pneg %p166
      // Predicated region
      $region29: #{tpu_custom_call.1} parent=5 // pred_check
        _
      $region30: #{tpu_custom_call.1} parent=5 // pred_check_branch
        %169 = sbr.rel (%p166) target = $region32
      $region31: #{tpu_custom_call.1} parent=5 // pred_region
        %s170 = ssub.s32 %s16, 1
        %s171 = sand.u32 %s29, 1
        %s172 = scalar_lea.sflag [#allocation4], %s171
        %s173 = sand.u32 %s29, 1
        %s174 = smul.addr %s173, 32
        %s175 = scalar_lea.vmem [#allocation3], %s174
        // Predicated region
        $region33: #{tpu_custom_call.1} parent=31 // pred_check
          %p176 = pneg %p42
        $region34: #{tpu_custom_call.1} parent=31 // pred_check_branch
          %178 = sbr.rel (%p176) target = $region36
        $region35: #{tpu_custom_call.1} parent=31 // pred_region
          %179 = dma.done %s172, 512
        $region36: #{tpu_custom_call.1} parent=31 // pred_fallthru
          _
        %s180 = sand.u32 %s29, 1
        %s181 = scalar_lea.sflag [#allocation4], %s180
        %s182 = sand.u32 %s29, 1
        %s183 = smul.addr %s182, 32
        %s184 = scalar_lea.vmem [#allocation3], %s183
        %p185 = pneg %p42
        %p186 = pneg %p39
        %p187 = scmp.lt.s32.totalorder %s21, 1
        %s188 = scalar_select %p187, %s21, 1
        %s189 = scalar_lea.vmem %s1, %s188
        %p190 = pneg %p68
        %p191 = pneg %p65
        %p192 = pneg %p89
        %p193 = pneg %p86
        %p194 = pneg %p115
        %p195 = pneg %p112
        %s196 = sand.u32 %s102, 1
        %s197 = scalar_lea.sflag [#allocation5], %s196
        %s198 = sand.u32 %s102, 1
        %s199 = scalar_lea.vmem [#allocation6], %s198
        %s200 = smul.u32 4, %s21
        %p201 = scmp.lt.s32.totalorder %s21, 1
        %s202 = scalar_select %p201, %s21, 1
        %s203 = scalar_lea.vmem %s1, %s202
        %v204 = vld [vmem:[%s175] sm:$0xff]
        %v205 = vld [vmem:[%s175 + $0x8] sm:$0xff]
        %v206 = vld [vmem:[%s175 + $0x10] sm:$0xff]
        %v207 = vld [vmem:[%s175 + $0x18] sm:$0xff]
        %s208 = sld [smem:[#allocation2]]
        %v209 = vld [vmem:[%s203] sm:$0x1]
        %v210 = vlaneseq
        %v211 = vshrl.u32 %v210, 7
        %v212 = vsub.s32 0, %v211
        %v213 = vrot.slane %v209, %v212
        %215 = vbcast.lane.b32.xlu0 %v213, 256
        %v216 = vpop.permute.xlu0 %215
        %s218 = sor.u32 256, 8
        %219 = vbcast.lane.b32.xlu0 %v213, %s218
        %v220 = vpop.permute.xlu0 %219
        %s222 = sor.u32 256, 16
        %223 = vbcast.lane.b32.xlu0 %v213, %s222
        %v224 = vpop.permute.xlu0 %223
        %s226 = sor.u32 256, 24
        %227 = vbcast.lane.b32.xlu0 %v213, %s226
        %v228 = vpop.permute.xlu0 %227
        %v229 = vmul.f32 %v204, %v204
        %v230 = vmul.f32 %v205, %v205
        %v231 = vmul.f32 %v206, %v206
        %v232 = vmul.f32 %v207, %v207
        %233 = vadd.xlane.f32.xlu0 %v229
        %v234 = vpop.xlane.xlu0 %233
        %235 = vadd.xlane.f32.xlu0 %v230
        %v236 = vpop.xlane.xlu0 %235
        %237 = vadd.xlane.f32.xlu0 %v231
        %v238 = vpop.xlane.xlu0 %237
        %239 = vadd.xlane.f32.xlu0 %v232
        %v240 = vpop.xlane.xlu0 %239
        %241 = vmax.xlane.f32.xlu0 %v204
        %v242 = vpop.xlane.xlu0 %241
        %243 = vmax.xlane.f32.xlu0 %v205
        %v244 = vpop.xlane.xlu0 %243
        %245 = vmax.xlane.f32.xlu0 %v206
        %v246 = vpop.xlane.xlu0 %245
        %247 = vmax.xlane.f32.xlu0 %v207
        %v248 = vpop.xlane.xlu0 %247
        %249 = vmin.xlane.f32.xlu0 %v204
        %v250 = vpop.xlane.xlu0 %249
        %251 = vmin.xlane.f32.xlu0 %v205
        %v252 = vpop.xlane.xlu0 %251
        %253 = vmin.xlane.f32.xlu0 %v206
        %v254 = vpop.xlane.xlu0 %253
        %255 = vmin.xlane.f32.xlu0 %v207
        %v256 = vpop.xlane.xlu0 %255
        %v257 = vlaneseq
        %v258 = vand.u32 %v257, 127
        %vm259 = vcmp.eq.s32.totalorder %v258, %v216
        %vm260 = vcmp.eq.s32.totalorder %v258, %v220
        %vm261 = vcmp.eq.s32.totalorder %v258, %v224
        %vm262 = vcmp.eq.s32.totalorder %v258, %v228
        %v263 = vsel %vm259, %v204, 0.0
        %v264 = vsel %vm260, %v205, 0.0
        %v265 = vsel %vm261, %v206, 0.0
        %v266 = vsel %vm262, %v207, 0.0
        %267 = vadd.xlane.f32.xlu0 %v263
        %v268 = vpop.xlane.xlu0 %267
        %269 = vadd.xlane.f32.xlu0 %v264
        %v270 = vpop.xlane.xlu0 %269
        %271 = vadd.xlane.f32.xlu0 %v265
        %v272 = vpop.xlane.xlu0 %271
        %273 = vadd.xlane.f32.xlu0 %v266
        %v274 = vpop.xlane.xlu0 %273
        %v275 = vrsqrt.pop %v234
        %v276 = vmul.f32 %v234, %v275
        %vm277 = vcmp.eq.f32.partialorder %v234, inf
        %v278 = vsel %vm277, %v234, %v276
        %vm279 = vcmp.eq.f32.partialorder %v234, 0.0
        %v280 = vand.u32 %v234, 2147483648
        %v281 = vsel %vm279, %v280, %v278
        %v282 = vrsqrt.pop %v236
        %v283 = vmul.f32 %v236, %v282
        %vm284 = vcmp.eq.f32.partialorder %v236, inf
        %v285 = vsel %vm284, %v236, %v283
        %vm286 = vcmp.eq.f32.partialorder %v236, 0.0
        %v287 = vand.u32 %v236, 2147483648
        %v288 = vsel %vm286, %v287, %v285
        %v289 = vrsqrt.pop %v238
        %v290 = vmul.f32 %v238, %v289
        %vm291 = vcmp.eq.f32.partialorder %v238, inf
        %v292 = vsel %vm291, %v238, %v290
        %vm293 = vcmp.eq.f32.partialorder %v238, 0.0
        %v294 = vand.u32 %v238, 2147483648
        %v295 = vsel %vm293, %v294, %v292
        %v296 = vrsqrt.pop %v240
        %v297 = vmul.f32 %v240, %v296
        %vm298 = vcmp.eq.f32.partialorder %v240, inf
        %v299 = vsel %vm298, %v240, %v297
        %vm300 = vcmp.eq.f32.partialorder %v240, 0.0
        %v301 = vand.u32 %v240, 2147483648
        %v302 = vsel %vm300, %v301, %v299
        %v303 = vadd.f32 %v281, 1e-07
        %v304 = vadd.f32 %v288, 1e-07
        %v305 = vadd.f32 %v295, 1e-07
        %v306 = vadd.f32 %v302, 1e-07
        %v307 = vstv %s208
        %v308 = vrcp.pop %v303
        %v309 = vmul.f32 %v307, %v308
        %v310 = vrcp.pop %v304
        %v311 = vmul.f32 %v307, %v310
        %v312 = vrcp.pop %v305
        %v313 = vmul.f32 %v307, %v312
        %v314 = vrcp.pop %v306
        %v315 = vmul.f32 %v307, %v314
        %p316 = scmp.ge.f32.partialorder %s208, 0.0
        %s317 = scalar_select %p316, 1, 0
        %v318 = vstv %s317
        %vm319 = vcmp.eq.s32.totalorder %v318, 1
        %v320 = vsel %vm319, %v242, %v250
        %v321 = vsel %vm319, %v244, %v252
        %v322 = vsel %vm319, %v246, %v254
        %v323 = vsel %vm319, %v248, %v256
        %v324 = vmul.f32 %v309, %v320
        %v325 = vmul.f32 %v311, %v321
        %v326 = vmul.f32 %v313, %v322
        %v327 = vmul.f32 %v315, %v323
        %v328 = vmul.f32 %v204, %v309
        %v329 = vmul.f32 %v205, %v311
        %v330 = vmul.f32 %v206, %v313
        %v331 = vmul.f32 %v207, %v315
        %v332 = vsub.f32 %v328, %v324
        %v333 = vsub.f32 %v329, %v325
        %v334 = vsub.f32 %v330, %v326
        %v335 = vsub.f32 %v331, %v327
        %v336 = vmul.f32 %v332, 1.442695
        %v337 = vpow.pop %v336
        %v338 = vmul.f32 %v333, 1.442695
        %v339 = vpow.pop %v338
        %v340 = vmul.f32 %v334, 1.442695
        %v341 = vpow.pop %v340
        %v342 = vmul.f32 %v335, 1.442695
        %v343 = vpow.pop %v342
        %344 = vadd.xlane.f32.xlu0 %v337
        %v345 = vpop.xlane.xlu0 %344
        %346 = vadd.xlane.f32.xlu0 %v339
        %v347 = vpop.xlane.xlu0 %346
        %348 = vadd.xlane.f32.xlu0 %v341
        %v349 = vpop.xlane.xlu0 %348
        %350 = vadd.xlane.f32.xlu0 %v343
        %v351 = vpop.xlane.xlu0 %350
        %v352 = vlog2.pop %v345
        %v353 = vmul.f32 %v352, 0.6931472
        %v354 = vlog2.pop %v347
        %v355 = vmul.f32 %v354, 0.6931472
        %v356 = vlog2.pop %v349
        %v357 = vmul.f32 %v356, 0.6931472
        %v358 = vlog2.pop %v351
        %v359 = vmul.f32 %v358, 0.6931472
        %v360 = vadd.f32 %v324, %v353
        %v361 = vadd.f32 %v325, %v355
        %v362 = vadd.f32 %v326, %v357
        %v363 = vadd.f32 %v327, %v359
        %v364 = vmul.f32 %v309, %v268
        %v365 = vmul.f32 %v311, %v270
        %v366 = vmul.f32 %v313, %v272
        %v367 = vmul.f32 %v315, %v274
        %v368 = vsub.f32 %v360, %v364
        %v369 = vsub.f32 %v361, %v365
        %v370 = vsub.f32 %v362, %v366
        %v371 = vsub.f32 %v363, %v367
        %s372 = smul.u32 %s21, 32
        %v373 = vlaneseq
        %v374 = vshrl.u32 %v373, 7
        %v375 = vadd.s32 %v374, 8
        %v376 = vadd.s32 %v374, 16
        %v377 = vadd.s32 %v374, 24
        %v378 = vstv %s372
        %v379 = vadd.s32 %v378, %v374
        %v380 = vadd.s32 %v378, %v375
        %v381 = vadd.s32 %v378, %v376
        %v382 = vadd.s32 %v378, %v377
        %vm383 = vcmp.lt.s32.totalorder %v379, 64
        %vm384 = vcmp.lt.s32.totalorder %v380, 64
        %vm385 = vcmp.lt.s32.totalorder %v381, 64
        %vm386 = vcmp.lt.s32.totalorder %v382, 64
        %v387 = vsel %vm383, %v368, 0.0
        %v388 = vsel %vm384, %v369, 0.0
        %v389 = vsel %vm385, %v370, 0.0
        %v390 = vsel %vm386, %v371, 0.0
        %vm391 = vcmask 7168
        %v392 = vsel %vm391, %v387, 0.0
        %v393 = vsel %vm391, %v388, 0.0
        %v394 = vadd.f32 %v392, %v393
        %v395 = vsel %vm391, %v389, 0.0
        %v396 = vadd.f32 %v394, %v395
        %v397 = vsel %vm391, %v390, 0.0
        %v398 = vadd.f32 %v396, %v397
        %399 = vadd.xlane.f32.xlu0 %v398
        %v400 = vpop.xlane.xlu0 %399
        %v401 = vrot.slane %v400, 4
        %v402 = vadd.f32 %v400, %v401
        %v403 = vrot.slane %v402, 2
        %v404 = vadd.f32 %v402, %v403
        %v405 = vrot.slane %v404, 1
        %v406 = vadd.f32 %v404, %v405
        %s407 = vtos %v406
        %v408 = vstv %s407
        %409 = vst [vmem:[%s199] sm:$0x1] %v408
        %s410 = sand.u32 %s102, 1
        %s411 = scalar_lea.sflag [#allocation5], %s410
        %s412 = sand.u32 %s102, 1
        %s413 = scalar_lea.vmem [#allocation6], %s412
        // Predicated region
        $region37: #{tpu_custom_call.1} parent=31 // pred_check
          %p414 = pneg %p112
        $region38: #{tpu_custom_call.1} parent=31 // pred_check_branch
          %416 = sbr.rel (%p414) target = $region40
        $region39: #{tpu_custom_call.1} parent=31 // pred_region
          %s418 = ssub.s32 16, 16
          %419 = vsyncadd %s411, %s418
          %s420 = smul.addr %s21, 16
          %s421 = scalar_lea.hbm %s3, %s420
          %s423 = sshll.u32 %s413, 4
          %s424 = int_to_ptr.vmem [resolvable:$true] %s423
          %426 = dma.vmem_to_hbm [thread:$0]  %s424, 16, %s421, %s411
        $region40: #{tpu_custom_call.1} parent=31 // pred_fallthru
          _
      $region32: #{tpu_custom_call.1} parent=5 // pred_fallthru
        _
      %p427 = scmp.le.s32.totalorder 2, %s16
      // Predicated region
      $region41: #{tpu_custom_call.1} parent=5 // pred_check
        %p428 = pneg %p427
      $region42: #{tpu_custom_call.1} parent=5 // pred_check_branch
        %430 = sbr.rel (%p428) target = $region44
      $region43: #{tpu_custom_call.1} parent=5 // pred_region
        %s431 = ssub.s32 %s16, 2
        // Predicated region
        $region45: #{tpu_custom_call.1} parent=43 // pred_check
          %p432 = pneg %p118
        $region46: #{tpu_custom_call.1} parent=43 // pred_check_branch
          %434 = sbr.rel (%p432) target = $region48
        $region47: #{tpu_custom_call.1} parent=43 // pred_region
          %s435 = sand.u32 %s103, 1
          %s436 = scalar_lea.sflag [#allocation5], %s435
          %s437 = sand.u32 %s103, 1
          %s438 = scalar_lea.vmem [#allocation6], %s437
          %439 = dma.done %s436, 16
        $region48: #{tpu_custom_call.1} parent=43 // pred_fallthru
          _
      $region44: #{tpu_custom_call.1} parent=5 // pred_fallthru
        _
    $region6: #{tpu_custom_call.1} parent=1 // loop_footer
      %s20 = sadd.s32 1, %s16
    $region7: #{tpu_custom_call.1} parent=1 // loop_footer_branch
      %15 = sbr.rel target = $region3
    $region8: #{tpu_custom_call.1} parent=1 // loop_exit
      _
    %440 = vsyncpa [#allocation4], 1
    %s441 = scalar_lea.sflag [#allocation4], 1
    %442 = vsyncpa %s441, 1
    %443 = vsyncpa [#allocation5], 1
    %s444 = scalar_lea.sflag [#allocation5], 1
    %445 = vsyncpa %s444, 1

</llo_original>
